<compile_context>
chip_gen: v6e
topology: v6e:2x2x1
jax: 0.10.0
libtpu: 0.0.40
codegen_flags: <defaults>
</compile_context>

<pallas_src>
import jax
import jax.numpy as jnp
from jax.experimental import pallas as pl
from jax.experimental.pallas import tpu as pltpu


def onebyone_kernel(x_ref, w_ref, z_ref):
    # Hot path: one MXU matmul per batch tile, f32 accumulation.
    z_ref[...] = jnp.dot(
        x_ref[...], w_ref[...], preferred_element_type=jnp.float32
    ).astype(z_ref.dtype)


def _pick_tile_m(b_padded, dim, itemsize, vmem_budget_bytes=24 << 20):
    """Largest batch tile (multiple of 8) whose double-buffered x/z tiles plus
    a resident W fit comfortably in scoped VMEM (conservative for v7x)."""
    tm = min(1024, b_padded)
    w_bytes = 2 * dim * dim * 4  # W double-buffer (f32)
    while tm > 8:
        tile_bytes = 2 * 2 * tm * dim * itemsize  # x + z, double-buffered
        if tile_bytes + w_bytes <= vmem_budget_bytes:
            break
        tm //= 2
    return max(8, tm)


def onebyone_conv_forward(x, W, v):
    """Equivalent of OneByOneConv.forward(x, v) -> (z, log_det)."""
    B, dim = x.shape

    # log_det = slogdet(W)[1].repeat(B) * v.
    # TODO(synk): slogdet (LU factorization) has no clean Pallas equivalent; it
    # is a tiny O(dim^3) scalar op, and the *v multiply is a trivial B-element
    # VPU op, so both live in plain JAX glue (also removes the lane-width-1
    # output stream from the kernel).
    log_det = (jnp.linalg.slogdet(W)[1] * v.astype(jnp.float32)).astype(v.dtype)

    itemsize = jnp.dtype(x.dtype).itemsize
    # Pad the batch dim so tiles are full (and sublane-aligned); sliced off at
    # the end.  Padding is cheap relative to the HBM-bound matmul stream.
    b_pad8 = ((B + 7) // 8) * 8
    tm = _pick_tile_m(b_pad8, dim, itemsize)
    b_padded = ((b_pad8 + tm - 1) // tm) * tm
    if b_padded != B:
        x_in = jnp.pad(x, ((0, b_padded - B), (0, 0)))
    else:
        x_in = x
    grid_m = b_padded // tm

    cost = pl.CostEstimate(
        flops=2 * b_padded * dim * dim,
        bytes_accessed=itemsize * (2 * b_padded * dim) + 4 * dim * dim,
        transcendentals=0,
    )

    z_padded = pl.pallas_call(
        onebyone_kernel,
        out_shape=jax.ShapeDtypeStruct((b_padded, dim), x.dtype),
        grid=(grid_m,),
        in_specs=[
            # x: one (tm, dim) batch tile per grid step (pipelined DMA).
            pl.BlockSpec((tm, dim), lambda i: (i, 0)),
            # W: same block every step -> fetched once, resident in VMEM.
            pl.BlockSpec((dim, dim), lambda i: (0, 0)),
        ],
        out_specs=pl.BlockSpec((tm, dim), lambda i: (i, 0)),
        compiler_params=pltpu.CompilerParams(
            dimension_semantics=("parallel",),
        ),
        cost_estimate=cost,
    )(x_in, W)

    z = z_padded[:B] if b_padded != B else z_padded
    return z, log_det


if __name__ == "__main__":
    key = jax.random.PRNGKey(0)
    k_w, k_x, k_v = jax.random.split(key, 3)

    B, dim = 8, 32

    # Deterministic parameter init: orthogonal W via QR of a random matrix
    # (mirrors sp.linalg.qr(np.random.randn(dim, dim)) in the module's __init__).
    A = jax.random.normal(k_w, (dim, dim), dtype=jnp.float32)
    W, _ = jnp.linalg.qr(A)
    W = W.astype(jnp.float32)

    x = jax.random.normal(k_x, (B, dim), dtype=jnp.float32)
    v = jax.random.normal(k_v, (B,), dtype=jnp.float32)

    z, log_det = onebyone_conv_forward(x, W, v)
    jax.block_until_ready((z, log_det))

    # Reference check against plain JAX semantics of the PyTorch forward.
    z_ref = x @ W
    ld_ref = jnp.linalg.slogdet(W)[1] * v

    assert z.shape == (B, dim) and log_det.shape == (B,)
    assert jnp.allclose(z, z_ref, atol=1e-5, rtol=1e-5), "z mismatch"
    assert jnp.allclose(log_det, ld_ref, atol=1e-5, rtol=1e-5), "log_det mismatch"

    print("KERNEL_OK")
</pallas_src>

<mosaic_0001>
module attributes {stable_mosaic.version = 11 : i64} {
  func.func @onebyone_kernel(%arg0: i32, %arg1: memref<8x32xf32, #tpu.memory_space<vmem>>, %arg2: memref<32x32xf32, #tpu.memory_space<vmem>>, %arg3: memref<8x32xf32, #tpu.memory_space<vmem>>) attributes {dimension_semantics = [#tpu.dimension_semantics<parallel>], iteration_bounds = array<i64: 1>, scalar_prefetch = 0 : i64, scratch_operands = 0 : i64, tpu.core_type = #tpu.core_type<tc>, window_params = [{transform_indices = @transform_0, window_bounds = array<i64: 8, 32>}, {pipeline_mode = #tpu.pipeline_mode<synchronous>, transform_indices = @transform_1, window_bounds = array<i64: 32, 32>}, {transform_indices = @transform_2, window_bounds = array<i64: 8, 32>}]} {
    %c0 = arith.constant 0 : index
    %c0_0 = arith.constant 0 : index
    %0 = vector.load %arg1[%c0, %c0_0] : memref<8x32xf32, #tpu.memory_space<vmem>>, vector<8x32xf32>
    %c0_1 = arith.constant 0 : index
    %c0_2 = arith.constant 0 : index
    %1 = vector.load %arg2[%c0_1, %c0_2] : memref<32x32xf32, #tpu.memory_space<vmem>>, vector<32x32xf32>
    %cst = arith.constant dense<0.000000e+00> : vector<8x32xf32>
    %2 = tpu.matmul %0, %1, %cst {dimension_numbers = #tpu.dot_dimension_numbers<[1], [0], [0], [1], [0, 0, 1, 1], [], []>} : vector<8x32xf32>, vector<32x32xf32>, vector<8x32xf32> -> vector<8x32xf32>
    %c0_3 = arith.constant 0 : index
    %c0_4 = arith.constant 0 : index
    %3 = vector.load %arg3[%c0_3, %c0_4] : memref<8x32xf32, #tpu.memory_space<vmem>>, vector<8x32xf32>
    tpu.vector_store %arg3[%c0_3, %c0_4], %2 {strides = array<i32>} : memref<8x32xf32, #tpu.memory_space<vmem>>, vector<8x32xf32>,
    return
  }
  func.func @transform_0(%arg0: i32) -> (i32, i32) {
    %c0_i32 = arith.constant 0 : i32
    %c0_i32_0 = arith.constant 0 : i32
    return %arg0, %c0_i32 : i32, i32
  }
  func.func @transform_1(%arg0: i32) -> (i32, i32) {
    %c0_i32 = arith.constant 0 : i32
    %c0_i32_0 = arith.constant 0 : i32
    %c0_i32_1 = arith.constant 0 : i32
    return %c0_i32, %c0_i32_0 : i32, i32
  }
  func.func @transform_2(%arg0: i32) -> (i32, i32) {
    %c0_i32 = arith.constant 0 : i32
    %c0_i32_0 = arith.constant 0 : i32
    return %arg0, %c0_i32 : i32, i32
  }
}

</mosaic_0001>

<llo_original>
// kernel: tpu_custom_call.1
$region0: #{tpu_custom_call.1}
  #allocation0 [shape = 'u32[]', space=smem, size = 0x4, offset = 0x4, fixed_abs, tag = 'smem constant byte address 0x4 - core index']
  #allocation1 [shape = 'u32[144,128]{1,0:T(1,128)}', space=vmem, size = 0x12000, scoped, tag = 'internal scratch']
  %s0 = inlined_call_operand.hbm [shape: f32[8,32], index: 0, kind: input, shape index: {}]
  %s1 = inlined_call_operand.hbm [shape: f32[32,32], index: 1, kind: input, shape index: {}]
  %s2 = inlined_call_operand.hbm [shape: f32[8,32], index: 2, kind: output, shape index: {}]
  %s3 = sld [smem:[#allocation0]]
  $region26: #{tpu_custom_call.1} parent=0
    _
  %s5 = ssub.s32 1, %s3
  %s6 = scalar_select 0, %s5, %s3
  $region1: #{tpu_custom_call.1} parent=0
    #allocation2 [shape = 'u8[4096]{0}', space=vmem, size = 0x1000, scoped, tag = 'input window, operand 0, single buffered']
    #allocation3 [shape = 's32[1]{0}', space=sflag, size = 0x4, scoped, tag = 'scoped memory for tpu_custom_call.1']
    #allocation4 [shape = 's32[1]{0}', space=sflag, size = 0x4, scoped, tag = 'scoped memory for tpu_custom_call.1']
    #allocation5 [shape = 'u8[16384]{0}', space=vmem, size = 0x4000, scoped, tag = 'input window, operand 1, single buffered']
    #allocation6 [shape = 's32[1]{0}', space=sflag, size = 0x4, scoped, tag = 'scoped memory for tpu_custom_call.1']
    #allocation7 [shape = 'u8[4096]{0}', space=vmem, size = 0x1000, scoped, tag = 'output window, operand 0, single buffered']
    %7 = vsyncpa [#allocation3], 0
    %8 = vsyncpa [#allocation6], 0
    %9 = vsyncpa [#allocation4], 0
    // Predicated region
    $region2: #{tpu_custom_call.1} parent=1 // pred_check
      _
    $region3: #{tpu_custom_call.1} parent=1 // pred_check_branch
      %11 = sbr.rel (0) target = $region5
    $region4: #{tpu_custom_call.1} parent=1 // pred_region
      %s13 = ssub.s32 128, 128
      %14 = vsyncadd [#allocation3], %s13
      %s16 = sshll.u32 [#allocation2], 4
      %s17 = int_to_ptr.vmem [resolvable:$true] %s16
      %19 = dma.hbm_to_vmem [thread:$0]  %s0, 128, %s17, [#allocation3]
    $region5: #{tpu_custom_call.1} parent=1 // pred_fallthru
      _
    // Predicated region
    $region6: #{tpu_custom_call.1} parent=1 // pred_check
      _
    $region7: #{tpu_custom_call.1} parent=1 // pred_check_branch
      %21 = sbr.rel (0) target = $region9
    $region8: #{tpu_custom_call.1} parent=1 // pred_region
      %s23 = ssub.s32 512, 512
      %24 = vsyncadd [#allocation6], %s23
      %s25 = sshll.u32 [#allocation5], 4
      %s26 = int_to_ptr.vmem [resolvable:$true] %s25
      %31 = dma.hbm_to_vmem [thread:$0]  %s1, 512, %s26, [#allocation6], 128, 128, 8
    $region9: #{tpu_custom_call.1} parent=1 // pred_fallthru
      _
    // Predicated region
    $region10: #{tpu_custom_call.1} parent=1 // pred_check
      _
    $region11: #{tpu_custom_call.1} parent=1 // pred_check_branch
      %33 = sbr.rel (0) target = $region13
    $region12: #{tpu_custom_call.1} parent=1 // pred_region
      %34 = dma.done [#allocation3], 128
    $region13: #{tpu_custom_call.1} parent=1 // pred_fallthru
      _
    // Predicated region
    $region14: #{tpu_custom_call.1} parent=1 // pred_check
      _
    $region15: #{tpu_custom_call.1} parent=1 // pred_check_branch
      %36 = sbr.rel (0) target = $region17
    $region16: #{tpu_custom_call.1} parent=1 // pred_region
      %37 = dma.done [#allocation6], 512
    $region17: #{tpu_custom_call.1} parent=1 // pred_fallthru
      _
    %v38 = vld [vmem:[#allocation2] sm:$0xff]
    %v39 = vld [vmem:[#allocation5] sm:$0xff]
    %v40 = vld [vmem:[#allocation5 + $0x8] sm:$0xff]
    %v41 = vld [vmem:[#allocation5 + $0x10] sm:$0xff]
    %v42 = vld [vmem:[#allocation5 + $0x18] sm:$0xff]
    %vm43 = vcmask 261120
    %v45 = vsel %vm43, %v38, 0
    %47 = vmatprep.subr.mxu0 0.0
    %48 = vmatpush1.msra.mxu0 0.0
    %49 = vmatprep.subr.mxu0 0.0
    %50 = vmatpush1.msra.mxu0 0.0
    %51 = vmatprep.subr.mxu0 0.0
    %52 = vmatpush1.msra.mxu0 0.0
    %53 = vmatprep.subr.mxu0 0.0
    %54 = vmatpush1.msra.mxu0 0.0
    %55 = vmatprep.subr.mxu0 0.0
    %56 = vmatpush1.msra.mxu0 0.0
    %57 = vmatprep.subr.mxu0 0.0
    %58 = vmatpush1.msra.mxu0 0.0
    %59 = vmatprep.subr.mxu0 0.0
    %60 = vmatpush1.msra.mxu0 0.0
    %61 = vmatprep.subr.mxu0 0.0
    %62 = vmatpush1.msra.mxu0 0.0
    %63 = vmatprep.subr.mxu0 0.0
    %64 = vmatpush1.msra.mxu0 0.0
    %65 = vmatprep.subr.mxu0 0.0
    %66 = vmatpush1.msra.mxu0 0.0
    %67 = vmatprep.subr.mxu0 0.0
    %68 = vmatpush1.msra.mxu0 0.0
    %69 = vmatprep.subr.mxu0 0.0
    %70 = vmatpush1.msra.mxu0 0.0
    %71 = vmatprep.subr.mxu0 0.0
    %72 = vmatpush1.msra.mxu0 %v42
    %73 = vmatprep.subr.mxu0 0.0
    %74 = vmatpush1.msra.mxu0 %v41
    %75 = vmatprep.subr.mxu0 0.0
    %76 = vmatpush1.msra.mxu0 %v40
    %77 = vmatprep.subr.mxu0 0.0
    %78 = vmatpush1.msra.mxu0 %v39
    %79 = vmatprep.subr.mxu0 0.0
    %80 = vmatpush2.msra.mxu0 0.0
    %81 = vmatprep.subr.mxu0 0.0
    %82 = vmatpush2.msra.mxu0 0.0
    %83 = vmatprep.subr.mxu0 0.0
    %84 = vmatpush2.msra.mxu0 0.0
    %85 = vmatprep.subr.mxu0 0.0
    %86 = vmatpush2.msra.mxu0 0.0
    %87 = vmatprep.subr.mxu0 0.0
    %88 = vmatpush2.msra.mxu0 0.0
    %89 = vmatprep.subr.mxu0 0.0
    %90 = vmatpush2.msra.mxu0 0.0
    %91 = vmatprep.subr.mxu0 0.0
    %92 = vmatpush2.msra.mxu0 0.0
    %93 = vmatprep.subr.mxu0 0.0
    %94 = vmatpush2.msra.mxu0 0.0
    %95 = vmatprep.subr.mxu0 0.0
    %96 = vmatpush2.msra.mxu0 0.0
    %97 = vmatprep.subr.mxu0 0.0
    %98 = vmatpush2.msra.mxu0 0.0
    %99 = vmatprep.subr.mxu0 0.0
    %100 = vmatpush2.msra.mxu0 0.0
    %101 = vmatprep.subr.mxu0 0.0
    %102 = vmatpush2.msra.mxu0 0.0
    %103 = vmatprep.subr.mxu0 0.0
    %104 = vmatpush2.msra.mxu0 0.0
    %105 = vmatprep.subr.mxu0 0.0
    %106 = vmatpush2.msra.mxu0 0.0
    %107 = vmatprep.subr.mxu0 0.0
    %108 = vmatpush2.msra.mxu0 0.0
    %109 = vmatprep.subr.mxu0 0.0
    %110 = vmatpush2.msra.mxu0 0.0
    %111 = vmatprep.mubr.f32.mxu0 0.0
    %112 = vmatmul.mubr.f32.gmra.mxu0 %v45
    %v113 = vpop.f32.mrf.mxu0
    %v114 = vadd.f32 0.0, %v113
    %v115 = vpop.f32.mrf.mxu0
    %116 = vdwg.mxu0
    %117 = vst.msk [vmem:[#allocation7] sm:$0xff] %vm43, %v114
    // Predicated region
    $region18: #{tpu_custom_call.1} parent=1 // pred_check
      _
    $region19: #{tpu_custom_call.1} parent=1 // pred_check_branch
      %119 = sbr.rel (0) target = $region21
    $region20: #{tpu_custom_call.1} parent=1 // pred_region
      %s121 = ssub.s32 128, 128
      %122 = vsyncadd [#allocation4], %s121
      %s124 = sshll.u32 [#allocation7], 4
      %s125 = int_to_ptr.vmem [resolvable:$true] %s124
      %127 = dma.vmem_to_hbm [thread:$0]  %s125, 128, %s2, [#allocation4]
    $region21: #{tpu_custom_call.1} parent=1 // pred_fallthru
      _
    // Predicated region
    $region22: #{tpu_custom_call.1} parent=1 // pred_check
      _
    $region23: #{tpu_custom_call.1} parent=1 // pred_check_branch
      %129 = sbr.rel (0) target = $region25
    $region24: #{tpu_custom_call.1} parent=1 // pred_region
      %130 = dma.done [#allocation4], 128
    $region25: #{tpu_custom_call.1} parent=1 // pred_fallthru
      _
    %131 = vsyncpa [#allocation3], 1
    %132 = vsyncpa [#allocation6], 1
    %133 = vsyncpa [#allocation4], 1

</llo_original>
